<compile_context>
chip_gen: v5e
topology: v5e:2x2
jax: 0.10.0
libtpu: 0.0.40
codegen_flags: <defaults>
</compile_context>

<pallas_src>
import jax
import jax.numpy as jnp
from jax.experimental import pallas as pl
from jax.experimental.pallas import tpu as pltpu


def _ldam_partial_kernel(nvalid_ref, pred_ref, target_ref, dg_ref, out_ref):
    """One batch tile: sum_i [logsumexp(margin_i) - margin_i[label_i]] over valid rows."""
    pred = pred_ref[...].astype(jnp.float32)            # (TN, C)
    tgt = target_ref[...]                                # (TN, 1) int32
    dg = dg_ref[...]                                     # (TN, 1) f32 = delta * gamma

    tn, c = pred.shape
    col_ids = jax.lax.broadcasted_iota(jnp.int32, (tn, c), 1)
    is_tgt = col_ids == tgt                              # (TN, C) bool mask

    # margin = pred - onehot * (delta*gamma), done with a single select (no float onehot)
    margin = jnp.where(is_tgt, pred - dg, pred)

    # numerically stable log-sum-exp per row
    m = jnp.max(margin, axis=-1, keepdims=True)
    lse = m + jnp.log(jnp.sum(jnp.exp(margin - m), axis=-1, keepdims=True))

    # margin value at the target class, via masked row-sum
    tgt_margin = jnp.sum(jnp.where(is_tgt, margin, 0.0), axis=-1, keepdims=True)
    per_sample = lse - tgt_margin                        # (TN, 1)

    # mask rows belonging to batch padding / partial last tile (garbage rows -> 0)
    row0 = pl.program_id(0) * tn
    row_ids = row0 + jax.lax.broadcasted_iota(jnp.int32, (tn, 1), 0)
    valid = row_ids < nvalid_ref[0]
    partial = jnp.sum(jnp.where(valid, per_sample, 0.0))

    # lane-dense partial-sum output block; mean/loss_weight folded in the wrapper
    out_ref[...] = jnp.broadcast_to(partial, (1, 1, 128)).astype(jnp.float32)


class LDAMLossPallas:
    """JAX/Pallas reimplementation of mmdet LDAMLoss (use_sigmoid=False, use_mask=False)."""

    def __init__(self, use_sigmoid=False, use_mask=False, reduction="mean",
                 loss_weight=1.0, samples_per_cls=None, complexity=0.3, delta=None,
                 _max_tile_rows=None):
        assert use_sigmoid is False and use_mask is False
        self.reduction = reduction
        self.loss_weight = float(loss_weight)
        self.samples_per_cls = samples_per_cls  # array-like of shape (C,) or None
        self.complexity = float(complexity)
        self.delta = delta
        self._max_tile_rows = _max_tile_rows    # testing hook to force multi-tile path

    def __call__(self, cls_score, label, weight=None, gamma=10.0,
                 avg_factor=None, reduction_override=None):
        assert reduction_override in (None, "none", "mean", "sum")
        reduction = reduction_override if reduction_override else self.reduction
        # TODO(synk): per-sample `weight` and reduction='none' need a per-sample-loss
        # output path; only the sum-based reductions are wired into the tiled kernel.
        assert weight is None
        if reduction == "none":
            raise NotImplementedError("reduction='none' not supported by this kernel")

        n, c = cls_score.shape
        label = label.astype(jnp.int32)

        # ---- per-sample delta * gamma (cheap glue, matches ldam_loss semantics) ----
        if self.delta is not None or self.samples_per_cls is None:
            if self.delta is None:
                raise ValueError(
                    "LDAMLoss: either `delta` or `samples_per_cls` must be provided.")
            dg_batch = jnp.full((n,), float(self.delta) * float(gamma), jnp.float32)
        else:
            spc = jnp.asarray(self.samples_per_cls, jnp.float32)
            delta_all = self.complexity / jnp.power(spc, 0.25)
            dg_batch = jnp.take(delta_all, label).astype(jnp.float32) * jnp.float32(gamma)

        # ---- pick TILE_N: ~2 MiB logits tile, budget includes lane-padded narrow blocks ----
        itemsize = jnp.dtype(cls_score.dtype).itemsize
        c_lanes = ((c + 127) // 128) * 128
        logits_row_bytes = c_lanes * itemsize
        narrow_row_bytes = 2 * 128 * 4            # (tile_n,1) label i32 + dg f32, lane-padded
        per_row_vmem = 2 * (logits_row_bytes + narrow_row_bytes)   # x2 pipeline buffers
        max_tile = min((2 * 1024 * 1024) // logits_row_bytes,
                       (8 * 1024 * 1024) // per_row_vmem)
        max_tile = max(8, (max_tile // 8) * 8)
        if self._max_tile_rows is not None:
            max_tile = max(8, min(max_tile, (int(self._max_tile_rows) // 8) * 8))

        if n <= max_tile:
            tile_n = n                            # full-extent block: no OOB rows at all
            num_tiles = 1
        else:
            tile_n = max_tile                     # multiple of 8; last tile may be partial
            num_tiles = (n + tile_n - 1) // tile_n

        target2d = label.reshape(n, 1)
        dg2d = dg_batch.reshape(n, 1)
        n_valid = jnp.array([n], jnp.int32)       # scalar-prefetch (SMEM)

        grid_spec = pltpu.PrefetchScalarGridSpec(
            num_scalar_prefetch=1,
            grid=(num_tiles,),
            in_specs=[
                pl.BlockSpec((tile_n, c), lambda i, nv: (i, 0)),   # full class extent, no pad
                pl.BlockSpec((tile_n, 1), lambda i, nv: (i, 0)),
                pl.BlockSpec((tile_n, 1), lambda i, nv: (i, 0)),
            ],
            out_specs=pl.BlockSpec((1, 1, 128), lambda i, nv: (i, 0, 0)),
        )

        partials = pl.pallas_call(
            _ldam_partial_kernel,
            out_shape=jax.ShapeDtypeStruct((num_tiles, 1, 128), jnp.float32),
            grid_spec=grid_spec,
            compiler_params=pltpu.CompilerParams(
                dimension_semantics=("parallel",)),
        )(n_valid, cls_score, target2d, dg2d)

        total = jnp.sum(partials[:, 0, 0])

        if reduction == "mean":
            denom = jnp.float32(avg_factor) if avg_factor is not None else jnp.float32(n)
            loss = total / denom
        else:  # 'sum'
            if avg_factor is not None:
                raise ValueError("avg_factor can only be used with reduction='mean'")
            loss = total

        return self.loss_weight * loss


if __name__ == "__main__":
    key = jax.random.PRNGKey(0)
    k1, k2, k3, k4, k5, k6 = jax.random.split(key, 6)

    def ref_loss(cls_score, label, samples_per_cls, gamma=10.0, complexity=0.3):
        cls_score = cls_score.astype(jnp.float32)
        delta_all = complexity / jnp.power(samples_per_cls.astype(jnp.float32), 0.25)
        delta_batch = jnp.take(delta_all, label)
        C = cls_score.shape[1]
        margin = cls_score - jax.nn.one_hot(label, C) * (delta_batch[:, None] * gamma)
        per = (jax.nn.logsumexp(margin, axis=-1)
               - jnp.take_along_axis(margin, label[:, None], axis=-1)[:, 0])
        return jnp.mean(per)

    # ---- case 1: batch of 8 samples, 32 classes, f32 ----
    N, C = 8, 32
    cls_score = jax.random.normal(k1, (N, C), dtype=jnp.float32)
    label = jax.random.randint(k2, (N,), 0, C, dtype=jnp.int32)
    spc = (10 + 5 * jnp.arange(C, dtype=jnp.int32)).astype(jnp.float32)

    loss_mod = LDAMLossPallas(reduction="mean", loss_weight=1.0,
                              samples_per_cls=spc, complexity=0.3)
    loss = loss_mod(cls_score, label, gamma=10.0)
    jax.block_until_ready(loss)
    ref = ref_loss(cls_score, label, spc)
    assert jnp.allclose(loss, ref, atol=1e-5, rtol=1e-5), (loss, ref)

    # ---- case 2: ragged shapes (N=10, C=37), N not a multiple of 8, C not mult of 128 ----
    N2, C2 = 10, 37
    cls_score2 = jax.random.normal(k3, (N2, C2), dtype=jnp.float32)
    label2 = jax.random.randint(k4, (N2,), 0, C2, dtype=jnp.int32)
    spc2 = (3 + 2 * jnp.arange(C2, dtype=jnp.int32)).astype(jnp.float32)

    loss_mod2 = LDAMLossPallas(reduction="mean", loss_weight=2.0,
                               samples_per_cls=spc2, complexity=0.3)
    loss2 = loss_mod2(cls_score2, label2, gamma=10.0)
    jax.block_until_ready(loss2)
    ref2 = 2.0 * ref_loss(cls_score2, label2, spc2)
    assert jnp.allclose(loss2, ref2, atol=1e-5, rtol=1e-5), (loss2, ref2)

    # ---- case 3: forced multi-tile path with a partial last tile (N=20, tile=8) ----
    N3, C3 = 20, 32
    cls_score3 = jax.random.normal(k5, (N3, C3), dtype=jnp.float32)
    label3 = jax.random.randint(k6, (N3,), 0, C3, dtype=jnp.int32)
    spc3 = (5 + 3 * jnp.arange(C3, dtype=jnp.int32)).astype(jnp.float32)

    loss_mod3 = LDAMLossPallas(reduction="mean", loss_weight=1.0,
                               samples_per_cls=spc3, complexity=0.3,
                               _max_tile_rows=8)
    loss3 = loss_mod3(cls_score3, label3, gamma=10.0)
    jax.block_until_ready(loss3)
    ref3 = ref_loss(cls_score3, label3, spc3)
    assert jnp.allclose(loss3, ref3, atol=1e-5, rtol=1e-5), (loss3, ref3)

    # ---- case 4: bf16 logits (half the HBM traffic; kernel upcasts to f32) ----
    cls_score_bf16 = cls_score.astype(jnp.bfloat16)
    loss4 = loss_mod(cls_score_bf16, label, gamma=10.0)
    jax.block_until_ready(loss4)
    ref4 = ref_loss(cls_score_bf16.astype(jnp.float32), label, spc)
    assert jnp.allclose(loss4, ref4, atol=1e-4, rtol=1e-4), (loss4, ref4)

    print("KERNEL_OK")
</pallas_src>

<mosaic_0001>
module attributes {stable_mosaic.version = 11 : i64} {
  func.func @_ldam_partial_kernel(%arg0: i32, %arg1: memref<1xi32, #tpu.memory_space<smem>>, %arg2: memref<8x32xf32, #tpu.memory_space<vmem>>, %arg3: memref<8x1xi32, #tpu.memory_space<vmem>>, %arg4: memref<8x1xf32, #tpu.memory_space<vmem>>, %arg5: memref<1x1x128xf32, #tpu.memory_space<vmem>>) attributes {dimension_semantics = [#tpu.dimension_semantics<parallel>], iteration_bounds = array<i64: 1>, scalar_prefetch = 1 : i64, scratch_operands = 0 : i64, tpu.core_type = #tpu.core_type<tc>, window_params = [{transform_indices = @transform_0, window_bounds = array<i64: 8, 32>}, {transform_indices = @transform_1, window_bounds = array<i64: 8, 1>}, {transform_indices = @transform_2, window_bounds = array<i64: 8, 1>}, {transform_indices = @transform_3, window_bounds = array<i64: 1, 1, 128>}]} {
    %c0 = arith.constant 0 : index
    %c0_0 = arith.constant 0 : index
    %0 = vector.load %arg2[%c0, %c0_0] : memref<8x32xf32, #tpu.memory_space<vmem>>, vector<8x32xf32>
    %c0_1 = arith.constant 0 : index
    %c0_2 = arith.constant 0 : index
    %1 = vector.load %arg3[%c0_1, %c0_2] : memref<8x1xi32, #tpu.memory_space<vmem>>, vector<8x1xi32>
    %c0_3 = arith.constant 0 : index
    %c0_4 = arith.constant 0 : index
    %2 = vector.load %arg4[%c0_3, %c0_4] : memref<8x1xf32, #tpu.memory_space<vmem>>, vector<8x1xf32>
    %3 = tpu.iota {dimensions = array<i32: 1>} : vector<8x32xi32>
    %4 = vector.broadcast %1 : vector<8x1xi32> to vector<8x32xi32>
    %5 = arith.cmpi eq, %3, %4 : vector<8x32xi32>
    %6 = vector.broadcast %2 : vector<8x1xf32> to vector<8x32xf32>
    %7 = arith.subf %0, %6 : vector<8x32xf32>
    %8 = arith.select %5, %7, %0 : vector<8x32xi1>, vector<8x32xf32>
    %cst = arith.constant dense<0xFF800000> : vector<8xf32>
    %9 = vector.multi_reduction <maximumf>, %8, %cst [1] : vector<8x32xf32> to vector<8xf32>
    %10 = vector.shape_cast %9 : vector<8xf32> to vector<8x1xf32>
    %11 = vector.broadcast %10 : vector<8x1xf32> to vector<8x32xf32>
    %12 = arith.subf %8, %11 : vector<8x32xf32>
    %13 = math.exp %12 : vector<8x32xf32>
    %cst_5 = arith.constant dense<0.000000e+00> : vector<8xf32>
    %14 = vector.multi_reduction <add>, %13, %cst_5 [1] : vector<8x32xf32> to vector<8xf32>
    %15 = vector.shape_cast %14 : vector<8xf32> to vector<8x1xf32>
    %16 = math.log %15 : vector<8x1xf32>
    %17 = arith.addf %10, %16 : vector<8x1xf32>
    %cst_6 = arith.constant 0.000000e+00 : f32
    %18 = vector.broadcast %cst_6 : f32 to vector<8x32xf32>
    %19 = arith.select %5, %8, %18 : vector<8x32xi1>, vector<8x32xf32>
    %cst_7 = arith.constant dense<0.000000e+00> : vector<8xf32>
    %20 = vector.multi_reduction <add>, %19, %cst_7 [1] : vector<8x32xf32> to vector<8xf32>
    %21 = vector.shape_cast %20 : vector<8xf32> to vector<8x1xf32>
    %22 = arith.subf %17, %21 : vector<8x1xf32>
    %c8_i32 = arith.constant 8 : i32
    %23 = arith.muli %arg0, %c8_i32 : i32
    %24 = tpu.iota {dimensions = array<i32: 0>} : vector<8x1xi32>
    %25 = vector.broadcast %23 : i32 to vector<8x1xi32>
    %26 = arith.addi %25, %24 : vector<8x1xi32>
    %c0_8 = arith.constant 0 : index
    %27 = memref.load %arg1[%c0_8] : memref<1xi32, #tpu.memory_space<smem>>
    %28 = vector.broadcast %27 : i32 to vector<8x1xi32>
    %29 = arith.cmpi slt, %26, %28 : vector<8x1xi32>
    %cst_9 = arith.constant 0.000000e+00 : f32
    %30 = vector.broadcast %cst_9 : f32 to vector<8x1xf32>
    %31 = arith.select %29, %22, %30 : vector<8x1xi1>, vector<8x1xf32>
    %32 = vector.shape_cast %31 : vector<8x1xf32> to vector<1x8x1xf32>
    %cst_10 = arith.constant dense<0.000000e+00> : vector<1xf32>
    %33 = vector.multi_reduction <add>, %32, %cst_10 [1, 2] : vector<1x8x1xf32> to vector<1xf32>
    %34 = vector.shape_cast %33 : vector<1xf32> to vector<1x1x1xf32>
    %35 = vector.extract %34[0, 0, 0] : f32 from vector<1x1x1xf32>
    %36 = vector.broadcast %35 : f32 to vector<1x1x128xf32>
    %c0_11 = arith.constant 0 : index
    %c0_12 = arith.constant 0 : index
    %c0_13 = arith.constant 0 : index
    %37 = vector.load %arg5[%c0_11, %c0_12, %c0_13] : memref<1x1x128xf32, #tpu.memory_space<vmem>>, vector<1x1x128xf32>
    tpu.vector_store %arg5[%c0_11, %c0_12, %c0_13], %36 {strides = array<i32>} : memref<1x1x128xf32, #tpu.memory_space<vmem>>, vector<1x1x128xf32>,
    return
  }
  func.func @transform_0(%arg0: i32, %arg1: memref<1xi32, #tpu.memory_space<smem>>) -> (i32, i32) {
    %c0_i32 = arith.constant 0 : i32
    %c0_i32_0 = arith.constant 0 : i32
    return %arg0, %c0_i32 : i32, i32
  }
  func.func @transform_1(%arg0: i32, %arg1: memref<1xi32, #tpu.memory_space<smem>>) -> (i32, i32) {
    %c0_i32 = arith.constant 0 : i32
    %c0_i32_0 = arith.constant 0 : i32
    return %arg0, %c0_i32 : i32, i32
  }
  func.func @transform_2(%arg0: i32, %arg1: memref<1xi32, #tpu.memory_space<smem>>) -> (i32, i32) {
    %c0_i32 = arith.constant 0 : i32
    %c0_i32_0 = arith.constant 0 : i32
    return %arg0, %c0_i32 : i32, i32
  }
  func.func @transform_3(%arg0: i32, %arg1: memref<1xi32, #tpu.memory_space<smem>>) -> (i32, i32, i32) {
    %c0_i32 = arith.constant 0 : i32
    %c0_i32_0 = arith.constant 0 : i32
    %c0_i32_1 = arith.constant 0 : i32
    return %arg0, %c0_i32, %c0_i32_0 : i32, i32, i32
  }
}

</mosaic_0001>

<llo_original>
// kernel: tpu_custom_call.1
$region0: #{tpu_custom_call.1}
  #allocation0 [shape = 'u32[]', space=smem, size = 0x4, offset = 0x4, fixed_abs, tag = 'smem constant byte address 0x4 - core index']
  #allocation1 [shape = 'u32[72,128]{1,0:T(1,128)}', space=vmem, size = 0x9000, scoped, tag = 'internal scratch']
  #allocation2 [shape = 's32[1]{0}', space=sflag, size = 0x4, scoped, tag = 'scoped memory for tpu_custom_call.1']
  #allocation3 [shape = 's32[1]{0:T(128)S(6)}', space=smem, size = 0x200, scoped, tag = 'prefetched SMEM operand 0']
  %s0 = inlined_call_operand.<no memory space> [shape: s32[1], index: 0, kind: input, shape index: {}]
  %s1 = inlined_call_operand.vmem [shape: f32[8,32], index: 1, kind: input, shape index: {}]
  %s2 = inlined_call_operand.vmem [shape: s32[8,1], index: 2, kind: input, shape index: {}]
  %s3 = inlined_call_operand.vmem [shape: f32[8,1], index: 3, kind: input, shape index: {}]
  %s4 = inlined_call_operand.hbm [shape: f32[1,1,128], index: 4, kind: output, shape index: {}]
  %s5 = sld [smem:[#allocation0]]
  $region22: #{tpu_custom_call.1} parent=0
    _
  %s7 = ssub.s32 1, %s5
  %s8 = scalar_select 0, %s7, %s5
  %9 = sst [smem:[#allocation3]] %s0
  $region1: #{tpu_custom_call.1} parent=0
    #allocation4 [shape = 'u8[512]{0}', space=vmem, size = 0x400, scoped, tag = 'output window, operand 0, single buffered']
    #allocation5 [shape = 's32[1]{0}', space=sflag, size = 0x4, scoped, tag = 'scoped memory for tpu_custom_call.1']
    %10 = vsyncpa [#allocation5], 0
    // Predicated region
    $region2: #{tpu_custom_call.1} parent=1 // pred_check
      _
    $region3: #{tpu_custom_call.1} parent=1 // pred_check_branch
      %12 = sbr.rel (0) target = $region5
    $region4: #{tpu_custom_call.1} parent=1 // pred_region
      _
    $region5: #{tpu_custom_call.1} parent=1 // pred_fallthru
      _
    // Predicated region
    $region6: #{tpu_custom_call.1} parent=1 // pred_check
      _
    $region7: #{tpu_custom_call.1} parent=1 // pred_check_branch
      %14 = sbr.rel (0) target = $region9
    $region8: #{tpu_custom_call.1} parent=1 // pred_region
      _
    $region9: #{tpu_custom_call.1} parent=1 // pred_fallthru
      _
    // Predicated region
    $region10: #{tpu_custom_call.1} parent=1 // pred_check
      _
    $region11: #{tpu_custom_call.1} parent=1 // pred_check_branch
      %16 = sbr.rel (0) target = $region13
    $region12: #{tpu_custom_call.1} parent=1 // pred_region
      _
    $region13: #{tpu_custom_call.1} parent=1 // pred_fallthru
      _
    %v17 = vld [vmem:[%s1] sm:$0xff]
    %v18 = vld [vmem:[%s2] sm:$0xff]
    %v19 = vld [vmem:[%s3] sm:$0xff]
    %v20 = vlaneseq
    %v21 = vand.u32 %v20, 127
    %22 = vset.pattern.permute.xlu0 0
    %23 = vperm.xlu0 %22, %v18
    %v24 = vpop.permute.xlu0 %23
    %vm25 = vcmp.eq.s32.totalorder %v21, %v24
    %27 = vset.pattern.permute.xlu0 0
    %28 = vperm.xlu0 %27, %v19
    %v29 = vpop.permute.xlu0 %28
    %v31 = vsub.f32 %v17, %v29
    %v32 = vsel %vm25, %v31, %v17
    %vm33 = vcmask 261120
    %v34 = vsel %vm33, %v32, -inf
    %35 = vmax.xlane.f32.xlu0 %v34
    %v36 = vpop.xlane.xlu0 %35
    %v37 = vsub.f32 %v32, %v36
    %v38 = vmul.f32 %v37, 1.442695
    %v39 = vpow.pop %v38
    %v40 = vsel %vm33, %v39, 0.0
    %41 = vadd.xlane.f32.xlu0 %v40
    %v42 = vpop.xlane.xlu0 %41
    %v43 = vlog2.pop %v42
    %v44 = vmul.f32 %v43, 0.6931472
    %v45 = vadd.f32 %v36, %v44
    %v46 = vsel %vm25, %v31, 0.0
    %v47 = vsel %vm33, %v46, 0.0
    %48 = vadd.xlane.f32.xlu0 %v47
    %v49 = vpop.xlane.xlu0 %48
    %v50 = vsub.f32 %v45, %v49
    %s51 = smul.u32 0, 8
    %v52 = vlaneseq
    %v53 = vshrl.u32 %v52, 7
    %v54 = vstv %s51
    %v55 = vadd.s32 %v54, %v53
    %s56 = sld [smem:[#allocation3]]
    %v57 = vstv %s56
    %vm58 = vcmp.lt.s32.totalorder %v55, %v57
    %v59 = vsel %vm58, %v50, 0.0
    %vm60 = vcmask 7168
    %v61 = vsel %vm60, %v59, 0.0
    %62 = vadd.xlane.f32.xlu0 %v61
    %v63 = vpop.xlane.xlu0 %62
    %v64 = vrot.slane %v63, 4
    %v65 = vadd.f32 %v63, %v64
    %v66 = vrot.slane %v65, 2
    %v67 = vadd.f32 %v65, %v66
    %v68 = vrot.slane %v67, 1
    %v69 = vadd.f32 %v67, %v68
    %s70 = vtos %v69
    %v71 = vstv %s70
    %72 = vst [vmem:[#allocation4] sm:$0x1] %v71
    // Predicated region
    $region14: #{tpu_custom_call.1} parent=1 // pred_check
      _
    $region15: #{tpu_custom_call.1} parent=1 // pred_check_branch
      %74 = sbr.rel (0) target = $region17
    $region16: #{tpu_custom_call.1} parent=1 // pred_region
      %76 = vsyncadd [#allocation5], 0
      %s78 = sshll.u32 [#allocation4], 4
      %s79 = int_to_ptr.vmem [resolvable:$true] %s78
      %s80 = sshll.u32 %s4, 4
      %s81 = int_to_ptr.hbm [resolvable:$true] %s80
      %83 = dma.vmem_to_hbm [thread:$0]  %s79, 16, %s81, [#allocation5]
    $region17: #{tpu_custom_call.1} parent=1 // pred_fallthru
      _
    // Predicated region
    $region18: #{tpu_custom_call.1} parent=1 // pred_check
      _
    $region19: #{tpu_custom_call.1} parent=1 // pred_check_branch
      %85 = sbr.rel (0) target = $region21
    $region20: #{tpu_custom_call.1} parent=1 // pred_region
      %87 = dma.done [#allocation5], 16
    $region21: #{tpu_custom_call.1} parent=1 // pred_fallthru
      _
    %88 = vsyncpa [#allocation5], 1

</llo_original>
